<compile_context>
chip_gen: v5e
topology: v5e:2x2
jax: 0.10.0
libtpu: 0.0.40
codegen_flags: <defaults>
</compile_context>

<pallas_src>
import math

import jax
import jax.numpy as jnp
from jax.experimental import pallas as pl
from jax.experimental.pallas import tpu as pltpu


def _round_up(x, m):
    return ((x + m - 1) // m) * m


def _discriminator_kernel(x_ref, s_ref, w_ref, o_ref, acc_ref):
    """Grid = (i: batch tiles, j: N tiles of h, k: K tiles of the matmul).

    x_ref: (TB, TH) f32      -- x[:, j-tile]
    s_ref: (TB, TH) bf16     -- summary[:, k-tile]
    w_ref: (TH, TH) bf16     -- W[k-tile, j-tile]
    o_ref: (TB, 1)  f32      -- out rows for batch tile i
    acc_ref: (TB, 1) f32 VMEM scratch, persistent across the (j, k) sweep.
    """
    j = pl.program_id(1)
    k = pl.program_id(2)
    last_j = pl.num_programs(1) - 1
    last_k = pl.num_programs(2) - 1

    @pl.when(jnp.logical_and(j == 0, k == 0))
    def _init():
        acc_ref[...] = jnp.zeros_like(acc_ref)

    # Partial h for this (j, k) tile on the MXU, accumulated in f32.
    h = jnp.dot(s_ref[...], w_ref[...], preferred_element_type=jnp.float32)
    # Elementwise product with x (f32 on the VPU) and lane-reduce over the
    # hidden tile (XLU slot, effectively free next to the MXU/VPU work).
    prod = x_ref[...].astype(jnp.float32) * h
    acc_ref[...] += jnp.sum(prod, axis=1, keepdims=True)

    @pl.when(jnp.logical_and(j == last_j, k == last_k))
    def _store():
        o_ref[...] = acc_ref[...].astype(o_ref.dtype)


def discriminator_forward(x, summary, weight, *, tile_b=256, tile_h=512,
                          mxu_dtype=jnp.bfloat16):
    """Pallas TPU Discriminator.forward.

    x:       (B, H)
    summary: (B, H)
    weight:  (H, H)
    returns: (B,) float32
    """
    B, H = x.shape
    assert summary.shape == (B, H), (summary.shape, (B, H))
    assert weight.shape == (H, H), (weight.shape, (H, H))

    # Effective tiles: sublane-aligned batch tile, lane-aligned hidden tile.
    tb = min(tile_b, _round_up(B, 8))
    th = min(tile_h, _round_up(H, 128))
    b_pad = _round_up(B, tb)
    h_pad = _round_up(H, th)

    # bf16 for the MXU operands (dominant HBM traffic), f32 for x / VPU math.
    xf = x.astype(jnp.float32)
    sf = summary.astype(mxu_dtype)
    wf = weight.astype(mxu_dtype)

    # Zero padding is exact for this op (padded rows/cols contribute 0).
    if b_pad != B or h_pad != H:
        xf = jnp.pad(xf, ((0, b_pad - B), (0, h_pad - H)))
        sf = jnp.pad(sf, ((0, b_pad - B), (0, h_pad - H)))
    if h_pad != H:
        wf = jnp.pad(wf, ((0, h_pad - H), (0, h_pad - H)))

    grid = (b_pad // tb, h_pad // th, h_pad // th)

    cost = pl.CostEstimate(
        flops=2 * b_pad * h_pad * h_pad + 2 * b_pad * h_pad,
        transcendentals=0,
        bytes_accessed=(xf.size * xf.dtype.itemsize
                        + sf.size * sf.dtype.itemsize
                        + wf.size * wf.dtype.itemsize
                        + b_pad * 4),
    )

    out = pl.pallas_call(
        _discriminator_kernel,
        out_shape=jax.ShapeDtypeStruct((b_pad, 1), jnp.float32),
        grid_spec=pltpu.PrefetchScalarGridSpec(
            num_scalar_prefetch=0,
            grid=grid,
            in_specs=[
                pl.BlockSpec((tb, th), lambda i, j, k: (i, j)),  # x
                pl.BlockSpec((tb, th), lambda i, j, k: (i, k)),  # summary
                pl.BlockSpec((th, th), lambda i, j, k: (k, j)),  # weight
            ],
            out_specs=pl.BlockSpec((tb, 1), lambda i, j, k: (i, 0)),
            scratch_shapes=[pltpu.VMEM((tb, 1), jnp.float32)],
        ),
        compiler_params=pltpu.CompilerParams(
            dimension_semantics=("parallel", "arbitrary", "arbitrary")),
        cost_estimate=cost,
    )(xf, sf, wf)

    return out[:B, 0]


def init_discriminator_weight(key, hidden_dim, dtype=jnp.float32):
    # Mirrors torch_geometric's `uniform(size, tensor)`:
    #   bound = 1 / sqrt(size); tensor.uniform_(-bound, bound)
    bound = 1.0 / math.sqrt(hidden_dim)
    return jax.random.uniform(
        key, (hidden_dim, hidden_dim), dtype=dtype, minval=-bound, maxval=bound
    )


def _reference(x, summary, weight, mxu_dtype=jnp.bfloat16):
    # Pure-JAX reference with the same bf16 MXU operands / f32 accumulation.
    h = jnp.dot(summary.astype(mxu_dtype), weight.astype(mxu_dtype),
                preferred_element_type=jnp.float32)
    return jnp.sum(x.astype(jnp.float32) * h, axis=1)


if __name__ == "__main__":
    key = jax.random.PRNGKey(0)
    k_w, k_x, k_s, k_w2, k_x2, k_s2 = jax.random.split(key, 6)

    # Case 1: the module's shipped toy sizes (single-tile after padding).
    B, H = 8, 32
    weight = init_discriminator_weight(k_w, H)
    x = jax.random.normal(k_x, (B, H), dtype=jnp.float32)
    summary = jax.random.normal(k_s, (B, H), dtype=jnp.float32)

    out = discriminator_forward(x, summary, weight)
    out = jax.block_until_ready(out)
    ref = _reference(x, summary, weight)
    assert out.shape == (B,)
    assert jnp.allclose(out, ref, atol=1e-3, rtol=1e-3), (out, ref)

    # Case 2: small shapes but a real multi-tile grid (3, 3, 3) to exercise
    # the accumulator init / accumulate / finalize path.
    B2, H2 = 24, 384
    weight2 = init_discriminator_weight(k_w2, H2)
    x2 = jax.random.normal(k_x2, (B2, H2), dtype=jnp.float32)
    summary2 = jax.random.normal(k_s2, (B2, H2), dtype=jnp.float32)

    out2 = discriminator_forward(x2, summary2, weight2, tile_b=8, tile_h=128)
    out2 = jax.block_until_ready(out2)
    ref2 = _reference(x2, summary2, weight2)
    assert out2.shape == (B2,)
    assert jnp.allclose(out2, ref2, atol=1e-2, rtol=1e-2), (out2, ref2)

    print("KERNEL_OK")
</pallas_src>

<mosaic_0001>
module attributes {stable_mosaic.version = 11 : i64} {
  func.func @_discriminator_kernel(%arg0: i32, %arg1: i32, %arg2: i32, %arg3: memref<8x128xf32, #tpu.memory_space<vmem>>, %arg4: memref<8x128xbf16, #tpu.memory_space<vmem>>, %arg5: memref<128x128xbf16, #tpu.memory_space<vmem>>, %arg6: memref<8x1xf32, #tpu.memory_space<vmem>>, %arg7: memref<8x1xf32, #tpu.memory_space<vmem>>) attributes {dimension_semantics = [#tpu.dimension_semantics<parallel>, #tpu.dimension_semantics<arbitrary>, #tpu.dimension_semantics<arbitrary>], iteration_bounds = array<i64: 1, 1, 1>, scalar_prefetch = 0 : i64, scratch_operands = 1 : i64, tpu.core_type = #tpu.core_type<tc>, window_params = [{transform_indices = @transform_0, window_bounds = array<i64: 8, 128>}, {transform_indices = @transform_1, window_bounds = array<i64: 8, 128>}, {transform_indices = @transform_2, window_bounds = array<i64: 128, 128>}, {transform_indices = @transform_3, window_bounds = array<i64: 8, 1>}]} {
    %c0_i32 = arith.constant 0 : i32
    %0 = arith.cmpi eq, %arg1, %c0_i32 : i32
    %c0_i32_0 = arith.constant 0 : i32
    %1 = arith.cmpi eq, %arg2, %c0_i32_0 : i32
    %2 = arith.andi %0, %1 : i1
    %3 = arith.extui %2 : i1 to i32
    %c0_i32_1 = arith.constant 0 : i32
    %4 = arith.cmpi ne, %3, %c0_i32_1 : i32
    scf.if %4 {
      %cst_15 = arith.constant 0.000000e+00 : f32
      %20 = vector.broadcast %cst_15 : f32 to vector<8x1xf32>
      %c0_16 = arith.constant 0 : index
      %c0_17 = arith.constant 0 : index
      %21 = vector.load %arg7[%c0_16, %c0_17] : memref<8x1xf32, #tpu.memory_space<vmem>>, vector<8x1xf32>
      tpu.vector_store %arg7[%c0_16, %c0_17], %20 {strides = array<i32>} : memref<8x1xf32, #tpu.memory_space<vmem>>, vector<8x1xf32>,
    } else {
    }
    %c0 = arith.constant 0 : index
    %c0_2 = arith.constant 0 : index
    %5 = vector.load %arg4[%c0, %c0_2] : memref<8x128xbf16, #tpu.memory_space<vmem>>, vector<8x128xbf16>
    %c0_3 = arith.constant 0 : index
    %c0_4 = arith.constant 0 : index
    %6 = vector.load %arg5[%c0_3, %c0_4] : memref<128x128xbf16, #tpu.memory_space<vmem>>, vector<128x128xbf16>
    %cst = arith.constant dense<0.000000e+00> : vector<8x128xf32>
    %7 = tpu.matmul %5, %6, %cst {dimension_numbers = #tpu.dot_dimension_numbers<[1], [0], [0], [1], [0, 0, 1, 1], [], []>} : vector<8x128xbf16>, vector<128x128xbf16>, vector<8x128xf32> -> vector<8x128xf32>
    %c0_5 = arith.constant 0 : index
    %c0_6 = arith.constant 0 : index
    %8 = vector.load %arg3[%c0_5, %c0_6] : memref<8x128xf32, #tpu.memory_space<vmem>>, vector<8x128xf32>
    %9 = arith.mulf %8, %7 : vector<8x128xf32>
    %c0_7 = arith.constant 0 : index
    %c0_8 = arith.constant 0 : index
    %10 = vector.load %arg7[%c0_7, %c0_8] : memref<8x1xf32, #tpu.memory_space<vmem>>, vector<8x1xf32>
    %cst_9 = arith.constant dense<0.000000e+00> : vector<8xf32>
    %11 = vector.multi_reduction <add>, %9, %cst_9 [1] : vector<8x128xf32> to vector<8xf32>
    %12 = vector.shape_cast %11 : vector<8xf32> to vector<8x1xf32>
    %13 = arith.addf %10, %12 : vector<8x1xf32>
    %c0_10 = arith.constant 0 : index
    %c0_11 = arith.constant 0 : index
    %14 = vector.load %arg7[%c0_10, %c0_11] : memref<8x1xf32, #tpu.memory_space<vmem>>, vector<8x1xf32>
    tpu.vector_store %arg7[%c0_10, %c0_11], %13 {strides = array<i32>} : memref<8x1xf32, #tpu.memory_space<vmem>>, vector<8x1xf32>,
    %c0_i32_12 = arith.constant 0 : i32
    %15 = arith.cmpi eq, %arg1, %c0_i32_12 : i32
    %c0_i32_13 = arith.constant 0 : i32
    %16 = arith.cmpi eq, %arg2, %c0_i32_13 : i32
    %17 = arith.andi %15, %16 : i1
    %18 = arith.extui %17 : i1 to i32
    %c0_i32_14 = arith.constant 0 : i32
    %19 = arith.cmpi ne, %18, %c0_i32_14 : i32
    scf.if %19 {
      %c0_15 = arith.constant 0 : index
      %c0_16 = arith.constant 0 : index
      %20 = vector.load %arg7[%c0_15, %c0_16] : memref<8x1xf32, #tpu.memory_space<vmem>>, vector<8x1xf32>
      %c0_17 = arith.constant 0 : index
      %c0_18 = arith.constant 0 : index
      %21 = vector.load %arg6[%c0_17, %c0_18] : memref<8x1xf32, #tpu.memory_space<vmem>>, vector<8x1xf32>
      tpu.vector_store %arg6[%c0_17, %c0_18], %20 {strides = array<i32>} : memref<8x1xf32, #tpu.memory_space<vmem>>, vector<8x1xf32>,
    } else {
    }
    return
  }
  func.func @transform_0(%arg0: i32, %arg1: i32, %arg2: i32) -> (i32, i32) {
    %c0_i32 = arith.constant 0 : i32
    return %arg0, %arg1 : i32, i32
  }
  func.func @transform_1(%arg0: i32, %arg1: i32, %arg2: i32) -> (i32, i32) {
    %c0_i32 = arith.constant 0 : i32
    return %arg0, %arg2 : i32, i32
  }
  func.func @transform_2(%arg0: i32, %arg1: i32, %arg2: i32) -> (i32, i32) {
    %c0_i32 = arith.constant 0 : i32
    return %arg2, %arg1 : i32, i32
  }
  func.func @transform_3(%arg0: i32, %arg1: i32, %arg2: i32) -> (i32, i32) {
    %c0_i32 = arith.constant 0 : i32
    %c0_i32_0 = arith.constant 0 : i32
    return %arg0, %c0_i32 : i32, i32
  }
}

</mosaic_0001>

<llo_original>
// kernel: tpu_custom_call.1
$region0: #{tpu_custom_call.1}
  #allocation0 [shape = 'u32[]', space=smem, size = 0x4, offset = 0x4, fixed_abs, tag = 'smem constant byte address 0x4 - core index']
  #allocation1 [shape = 'u32[72,128]{1,0:T(1,128)}', space=vmem, size = 0x9000, scoped, tag = 'internal scratch']
  #allocation2 [shape = 'f32[8,1]{1,0:T(8,128)}', space=vmem, size = 0x1000, scoped, tag = 'scratch operand']
  %s0 = inlined_call_operand.hbm [shape: f32[8,128], index: 0, kind: input, shape index: {}]
  %s1 = inlined_call_operand.hbm [shape: bf16[8,128], index: 1, kind: input, shape index: {}]
  %s2 = inlined_call_operand.hbm [shape: bf16[128,128], index: 2, kind: input, shape index: {}]
  %s3 = inlined_call_operand.vmem [shape: f32[8,1], index: 3, kind: output, shape index: {}]
  %s4 = sld [smem:[#allocation0]]
  $region42: #{tpu_custom_call.1} parent=0
    _
  %s6 = ssub.s32 1, %s4
  %s7 = scalar_select 0, %s6, %s4
  $region1: #{tpu_custom_call.1} parent=0
    #allocation3 [shape = 'u8[4096]{0}', space=vmem, size = 0x1000, scoped, tag = 'input window, operand 0, single buffered']
    #allocation4 [shape = 's32[1]{0}', space=sflag, size = 0x4, scoped, tag = 'scoped memory for tpu_custom_call.1']
    #allocation5 [shape = 'u8[2048]{0}', space=vmem, size = 0x800, scoped, tag = 'input window, operand 1, single buffered']
    #allocation6 [shape = 's32[1]{0}', space=sflag, size = 0x4, scoped, tag = 'scoped memory for tpu_custom_call.1']
    #allocation7 [shape = 'u8[32768]{0}', space=vmem, size = 0x8000, scoped, tag = 'input window, operand 2, single buffered']
    %8 = vsyncpa [#allocation4], 0
    %9 = vsyncpa [#allocation6], 0
    // Predicated region
    $region2: #{tpu_custom_call.1} parent=1 // pred_check
      _
    $region3: #{tpu_custom_call.1} parent=1 // pred_check_branch
      %11 = sbr.rel (0) target = $region5
    $region4: #{tpu_custom_call.1} parent=1 // pred_region
      %13 = vsyncadd [#allocation4], 0
      %s15 = sshll.u32 %s0, 4
      %s16 = int_to_ptr.hbm [resolvable:$true] %s15
      %s17 = sshll.u32 [#allocation3], 4
      %s18 = int_to_ptr.vmem [resolvable:$true] %s17
      %20 = dma.hbm_to_vmem [thread:$0]  %s16, 128, %s18, [#allocation4]
    $region5: #{tpu_custom_call.1} parent=1 // pred_fallthru
      _
    // Predicated region
    $region6: #{tpu_custom_call.1} parent=1 // pred_check
      _
    $region7: #{tpu_custom_call.1} parent=1 // pred_check_branch
      %22 = sbr.rel (0) target = $region9
    $region8: #{tpu_custom_call.1} parent=1 // pred_region
      %24 = vsyncadd [#allocation6], 0
      %s26 = sshll.u32 %s1, 4
      %s27 = int_to_ptr.hbm [resolvable:$true] %s26
      %s28 = sshll.u32 [#allocation5], 4
      %s29 = int_to_ptr.vmem [resolvable:$true] %s28
      %31 = dma.hbm_to_vmem [thread:$0]  %s27, 64, %s29, [#allocation6]
    $region9: #{tpu_custom_call.1} parent=1 // pred_fallthru
      _
    // Predicated region
    $region10: #{tpu_custom_call.1} parent=1 // pred_check
      _
    $region11: #{tpu_custom_call.1} parent=1 // pred_check_branch
      %33 = sbr.rel (0) target = $region13
    $region12: #{tpu_custom_call.1} parent=1 // pred_region
      %35 = vsyncadd [#allocation6], 0
      %s36 = sshll.u32 %s2, 4
      %s37 = int_to_ptr.hbm [resolvable:$true] %s36
      %s38 = sshll.u32 [#allocation7], 4
      %s39 = int_to_ptr.vmem [resolvable:$true] %s38
      %44 = dma.hbm_to_vmem [thread:$0]  %s37, 1024, %s39, [#allocation6], 64, 64, 4
    $region13: #{tpu_custom_call.1} parent=1 // pred_fallthru
      _
    // Predicated region
    $region14: #{tpu_custom_call.1} parent=1 // pred_check
      _
    $region15: #{tpu_custom_call.1} parent=1 // pred_check_branch
      %46 = sbr.rel (0) target = $region17
    $region16: #{tpu_custom_call.1} parent=1 // pred_region
      %48 = dma.done [#allocation4], 128
    $region17: #{tpu_custom_call.1} parent=1 // pred_fallthru
      _
    // Predicated region
    $region18: #{tpu_custom_call.1} parent=1 // pred_check
      _
    $region19: #{tpu_custom_call.1} parent=1 // pred_check_branch
      %50 = sbr.rel (0) target = $region21
    $region20: #{tpu_custom_call.1} parent=1 // pred_region
      %52 = dma.done [#allocation6], 64
    $region21: #{tpu_custom_call.1} parent=1 // pred_fallthru
      _
    // Predicated region
    $region22: #{tpu_custom_call.1} parent=1 // pred_check
      _
    $region23: #{tpu_custom_call.1} parent=1 // pred_check_branch
      %54 = sbr.rel (0) target = $region25
    $region24: #{tpu_custom_call.1} parent=1 // pred_region
      %56 = dma.done [#allocation6], 1024
    $region25: #{tpu_custom_call.1} parent=1 // pred_fallthru
      _
    %p57 = scmp.eq.s32.totalorder 0, 0
    %p58 = scmp.eq.s32.totalorder 0, 0
    %p59 = pnand %p57, %p58
    %p60 = pneg %p59
    // Predicated region
    $region26: #{tpu_custom_call.1} parent=1 // pred_check
      _
    $region27: #{tpu_custom_call.1} parent=1 // pred_check_branch
      %62 = sbr.rel (%p59) target = $region29
    $region28: #{tpu_custom_call.1} parent=1 // pred_region
      %vm63 = vcmask 7168
      %64 = vst.msk [vmem:[#allocation2] sm:$0xff] %vm63, 0.0
    $region29: #{tpu_custom_call.1} parent=1 // pred_fallthru
      _
    %v65 = vld [vmem:[#allocation5] sm:$0xf]
    %v66 = vld [vmem:[#allocation7] sm:$0xf]
    %v67 = vld [vmem:[#allocation7 + $0x4] sm:$0xf]
    %v68 = vld [vmem:[#allocation7 + $0x8] sm:$0xf]
    %v69 = vld [vmem:[#allocation7 + $0xc] sm:$0xf]
    %v70 = vld [vmem:[#allocation7 + $0x10] sm:$0xf]
    %v71 = vld [vmem:[#allocation7 + $0x14] sm:$0xf]
    %v72 = vld [vmem:[#allocation7 + $0x18] sm:$0xf]
    %v73 = vld [vmem:[#allocation7 + $0x1c] sm:$0xf]
    %v74 = vld [vmem:[#allocation7 + $0x20] sm:$0xf]
    %v75 = vld [vmem:[#allocation7 + $0x24] sm:$0xf]
    %v76 = vld [vmem:[#allocation7 + $0x28] sm:$0xf]
    %v77 = vld [vmem:[#allocation7 + $0x2c] sm:$0xf]
    %v78 = vld [vmem:[#allocation7 + $0x30] sm:$0xf]
    %v79 = vld [vmem:[#allocation7 + $0x34] sm:$0xf]
    %v80 = vld [vmem:[#allocation7 + $0x38] sm:$0xf]
    %v81 = vld [vmem:[#allocation7 + $0x3c] sm:$0xf]
    %v98 = vunpack.c.l.b16 %v66
    %v99 = vunpack.c.l.b16 %v67
    %v100 = vunpack.c.l.b16 %v68
    %v101 = vunpack.c.l.b16 %v69
    %v102 = vunpack.c.l.b16 %v70
    %v103 = vunpack.c.l.b16 %v71
    %v104 = vunpack.c.l.b16 %v72
    %v105 = vunpack.c.l.b16 %v73
    %v106 = vunpack.c.l.b16 %v74
    %v107 = vunpack.c.l.b16 %v75
    %v108 = vunpack.c.l.b16 %v76
    %v109 = vunpack.c.l.b16 %v77
    %v110 = vunpack.c.l.b16 %v78
    %v111 = vunpack.c.l.b16 %v79
    %v112 = vunpack.c.l.b16 %v80
    %v113 = vunpack.c.l.b16 %v81
    %v114 = vpack.c.b16 %v99, %v98
    %v115 = vpack.c.b16 %v101, %v100
    %v116 = vpack.c.b16 %v103, %v102
    %v117 = vpack.c.b16 %v105, %v104
    %v118 = vpack.c.b16 %v107, %v106
    %v119 = vpack.c.b16 %v109, %v108
    %v120 = vpack.c.b16 %v111, %v110
    %v121 = vpack.c.b16 %v113, %v112
    %130 = vmatpush.bf16.msra.mxu0 %v121
    %131 = vmatpush.bf16.msra.mxu0 %v120
    %132 = vmatpush.bf16.msra.mxu0 %v119
    %133 = vmatpush.bf16.msra.mxu0 %v118
    %134 = vmatpush.bf16.msra.mxu0 %v117
    %135 = vmatpush.bf16.msra.mxu0 %v116
    %136 = vmatpush.bf16.msra.mxu0 %v115
    %137 = vmatpush.bf16.msra.mxu0 %v114
    %138 = vmatmul.bf16.gmra.mxu0 %v65
    %v139 = vpop.f32.mrf.mxu0
    %v140 = vadd.f32 0.0, %v139
    %v141 = vpop.f32.mrf.mxu0
    %142 = vdwg.mxu0
    %v143 = vld [vmem:[#allocation3] sm:$0xff]
    %v144 = vmul.f32 %v143, %v140
    %v145 = vld [vmem:[#allocation2] sm:$0xff]
    %146 = vadd.xlane.f32.xlu0 %v144
    %v147 = vpop.xlane.xlu0 %146
    %v148 = vadd.f32 %v145, %v147
    %vm149 = vcmask 7168
    %150 = vst.msk [vmem:[#allocation2] sm:$0xff] %vm149, %v148
    // Predicated region
    $region30: #{tpu_custom_call.1} parent=1 // pred_check
      _
    $region31: #{tpu_custom_call.1} parent=1 // pred_check_branch
      %152 = sbr.rel (%p59) target = $region33
    $region32: #{tpu_custom_call.1} parent=1 // pred_region
      %v153 = vld [vmem:[#allocation2] sm:$0xff]
      %154 = vst.msk [vmem:[%s3] sm:$0xff] %vm149, %v153
    $region33: #{tpu_custom_call.1} parent=1 // pred_fallthru
      _
    // Predicated region
    $region34: #{tpu_custom_call.1} parent=1 // pred_check
      _
    $region35: #{tpu_custom_call.1} parent=1 // pred_check_branch
      %156 = sbr.rel (0) target = $region37
    $region36: #{tpu_custom_call.1} parent=1 // pred_region
      _
    $region37: #{tpu_custom_call.1} parent=1 // pred_fallthru
      _
    // Predicated region
    $region38: #{tpu_custom_call.1} parent=1 // pred_check
      _
    $region39: #{tpu_custom_call.1} parent=1 // pred_check_branch
      %158 = sbr.rel (0) target = $region41
    $region40: #{tpu_custom_call.1} parent=1 // pred_region
      _
    $region41: #{tpu_custom_call.1} parent=1 // pred_fallthru
      _
    %159 = vsyncpa [#allocation4], 1
    %160 = vsyncpa [#allocation6], 1

</llo_original>
